<compile_context>
chip_gen: v7x
topology: tpu7x:2x2x1
jax: 0.10.0
libtpu: 0.0.40
codegen_flags: <defaults>
</compile_context>

<pallas_src>
import math
import functools

import jax
import jax.numpy as jnp
from jax.experimental import pallas as pl
from jax.experimental.pallas import tpu as pltpu

LN_EPS = 1e-5
INV_SQRT2 = 1.0 / math.sqrt(2.0)


def _round_up(x, m):
    return pl.cdiv(x, m) * m


def _make_ffn_kernel(e_true, e_pad):
    """Build the kernel body with the true (unpadded) embed dim baked in."""
    inv_e = 1.0 / float(e_true)
    need_mask = e_pad != e_true

    def kernel(x_ref, g_ref, beta_ref, w1_ref, b1_ref, w2_ref, b2_ref, o_ref,
               xn_ref, acc_ref):
        # x_ref: (TM, Ep)   g/beta/b2: (1, Ep)   w1: (Ep, TF)   b1: (1, TF)
        # w2: (TF, Ep)      o_ref: (TM, Ep)
        # xn_ref: (TM, Ep) scratch (weight dtype)   acc_ref: (TM, Ep) f32 scratch
        j = pl.program_id(1)

        # --- phase 0 (first F block): LayerNorm once, init accumulator ---
        @pl.when(j == 0)
        def _():
            x = x_ref[...].astype(jnp.float32)
            mean = jnp.sum(x, axis=-1, keepdims=True) * inv_e
            cent = x - mean
            if need_mask:
                lane = jax.lax.broadcasted_iota(jnp.int32, cent.shape, 1)
                cent_m = jnp.where(lane < e_true, cent, 0.0)
            else:
                cent_m = cent
            var = jnp.sum(cent_m * cent_m, axis=-1, keepdims=True) * inv_e
            xn = cent * jax.lax.rsqrt(var + LN_EPS)
            # gamma/beta are zero-padded past e_true, so padded lanes become 0.
            xn = xn * g_ref[...].astype(jnp.float32) + beta_ref[...].astype(jnp.float32)
            xn_ref[...] = xn.astype(xn_ref.dtype)
            acc_ref[...] = jnp.zeros_like(acc_ref)

        # --- FC1 block + exact-erf GELU (f32), FC2 block accumulated in f32 ---
        # Operands stay in the native weight dtype; accumulation is f32 via
        # preferred_element_type (bf16 weights -> bf16-native MXU on v6e/v7x).
        h = jnp.dot(xn_ref[...], w1_ref[...], preferred_element_type=jnp.float32)
        h = h + b1_ref[...].astype(jnp.float32)
        h = 0.5 * h * (1.0 + jax.lax.erf(h * INV_SQRT2))
        acc_ref[...] += jnp.dot(h.astype(w2_ref.dtype), w2_ref[...],
                                preferred_element_type=jnp.float32)

        # --- last F block: bias, residual add, store (lane-dense, unmasked) ---
        @pl.when(j == pl.num_programs(1) - 1)
        def _():
            y = acc_ref[...] + b2_ref[...].astype(jnp.float32)
            o_ref[...] = (x_ref[...].astype(jnp.float32) + y).astype(o_ref.dtype)

    return kernel


def ffn_forward(x, gamma, beta, w1, b1, w2, b2, *, tm=256, tf=2048):
    """x: (B, S, E).  w1: (E, F), w2: (F, E).  Returns (B, S, E)."""
    B, S, E = x.shape
    E_w, F = w1.shape
    assert E_w == E and w2.shape == (F, E)
    T = B * S

    # --- tile sizes / padded extents ---
    tm = int(_round_up(max(tm, 8), 8))
    tm_eff = min(tm, int(_round_up(T, 8)))          # don't over-tile tiny inputs
    t_pad = int(_round_up(T, tm_eff))
    e_pad = int(_round_up(E, 128))                  # lane-dense embed axis
    if F <= tf:
        tf_eff, f_pad = F, F                        # whole hidden dim resident
    else:
        tf_eff = int(_round_up(tf, 128))
        f_pad = int(_round_up(F, tf_eff))

    w_dtype = w1.dtype
    x_bytes = jnp.dtype(x.dtype).itemsize
    w_bytes = jnp.dtype(w_dtype).itemsize

    # --- zero-pad operands (zeros are exactly neutral for LN/matmul/GELU/bias) ---
    x2d = jnp.pad(x.reshape(T, E), ((0, t_pad - T), (0, e_pad - E)))
    g2d = jnp.pad(gamma, (0, e_pad - E)).reshape(1, e_pad)
    be2d = jnp.pad(beta, (0, e_pad - E)).reshape(1, e_pad)
    w1p = jnp.pad(w1, ((0, e_pad - E), (0, f_pad - F)))
    b1p = jnp.pad(b1, (0, f_pad - F)).reshape(1, f_pad)
    w2p = jnp.pad(w2, ((0, f_pad - F), (0, e_pad - E)))
    b2p = jnp.pad(b2, (0, e_pad - E)).reshape(1, e_pad)

    grid = (t_pad // tm_eff, f_pad // tf_eff)

    # --- VMEM budget (double-buffered streams + scratch + GELU intermediate) ---
    vmem_est = (
        2 * tm_eff * e_pad * x_bytes            # x tile (double buffered)
        + 2 * tm_eff * e_pad * x_bytes          # out tile
        + 2 * e_pad * tf_eff * w_bytes          # w1 block
        + 2 * tf_eff * e_pad * w_bytes          # w2 block
        + tm_eff * e_pad * w_bytes              # xn scratch
        + tm_eff * e_pad * 4                    # f32 accumulator
        + 2 * tm_eff * tf_eff * 4               # (tm, tf) f32 GELU intermediate
        + 8 * (e_pad + tf_eff) * 4              # biases / gamma / beta
    )
    vmem_limit = int(min(max(vmem_est * 5 // 4, 16 * 1024 * 1024),
                         100 * 1024 * 1024))

    cost = pl.CostEstimate(
        flops=4 * t_pad * e_pad * f_pad,                     # two matmuls
        transcendentals=t_pad * f_pad,                       # erf
        bytes_accessed=(2 * t_pad * e_pad * x_bytes
                        + 2 * e_pad * f_pad * w_bytes
                        + (f_pad + 3 * e_pad) * 4),
    )

    kernel = _make_ffn_kernel(E, e_pad)

    # NOTE: gamma/beta/b2 (and w1/w2 when F fits in one block) are grid-invariant;
    # the compiler may still double-buffer them — acceptable at these block sizes.
    out = pl.pallas_call(
        kernel,
        out_shape=jax.ShapeDtypeStruct((t_pad, e_pad), x.dtype),
        grid_spec=pltpu.PrefetchScalarGridSpec(
            num_scalar_prefetch=0,
            grid=grid,
            in_specs=[
                pl.BlockSpec((tm_eff, e_pad), lambda i, j: (i, 0)),   # x tile
                pl.BlockSpec((1, e_pad), lambda i, j: (0, 0)),        # ln gamma
                pl.BlockSpec((1, e_pad), lambda i, j: (0, 0)),        # ln beta
                pl.BlockSpec((e_pad, tf_eff), lambda i, j: (0, j)),   # w1 block
                pl.BlockSpec((1, tf_eff), lambda i, j: (0, j)),       # b1 block
                pl.BlockSpec((tf_eff, e_pad), lambda i, j: (j, 0)),   # w2 block
                pl.BlockSpec((1, e_pad), lambda i, j: (0, 0)),        # b2
            ],
            out_specs=pl.BlockSpec((tm_eff, e_pad), lambda i, j: (i, 0)),
            scratch_shapes=[
                pltpu.VMEM((tm_eff, e_pad), w_dtype),      # LayerNorm output
                pltpu.VMEM((tm_eff, e_pad), jnp.float32),  # FC2 accumulator
            ],
        ),
        compiler_params=pltpu.CompilerParams(
            dimension_semantics=("parallel", "arbitrary"),
            vmem_limit_bytes=vmem_limit,
        ),
        cost_estimate=cost,
    )(x2d, g2d, be2d, w1p, b1p, w2p, b2p)

    return out[:T, :E].reshape(B, S, E)


def trunc_normal(key, shape, std=0.02, a=-0.02, b=0.02):
    # matches trunc_normal_(w, std=0.02, a=-0.02, b=0.02)
    lo, hi = a / std, b / std
    return std * jax.random.truncated_normal(key, lo, hi, shape, dtype=jnp.float32)


def init_ffn_params(key, embed_dims, dim_ffd):
    k1, k2 = jax.random.split(key, 2)
    # PyTorch Linear stores weight as (out, in); we keep (in, out) for the kernel.
    w1 = trunc_normal(k1, (dim_ffd, embed_dims)).T            # (E, F)
    b1 = jnp.zeros((dim_ffd,), jnp.float32)
    w2 = trunc_normal(k2, (embed_dims, dim_ffd)).T            # (F, E)
    b2 = jnp.zeros((embed_dims,), jnp.float32)
    gamma = jnp.ones((embed_dims,), jnp.float32)               # LayerNorm weight
    beta = jnp.zeros((embed_dims,), jnp.float32)               # LayerNorm bias
    return gamma, beta, w1, b1, w2, b2


def ffn_reference(x, gamma, beta, w1, b1, w2, b2):
    xf = x.astype(jnp.float32)
    mean = jnp.mean(xf, axis=-1, keepdims=True)
    var = jnp.mean((xf - mean) ** 2, axis=-1, keepdims=True)
    xn = (xf - mean) * jax.lax.rsqrt(var + LN_EPS) * gamma + beta
    h = xn @ w1 + b1
    h = 0.5 * h * (1.0 + jax.lax.erf(h / math.sqrt(2.0)))
    y = h @ w2 + b2
    return x + y


if __name__ == "__main__":
    B, S, E, Fd = 2, 8, 32, 64   # batch, seq, embed_dims, dim_ffd
    key = jax.random.PRNGKey(0)
    kx, kp = jax.random.split(key)

    x = jax.random.normal(kx, (B, S, E), dtype=jnp.float32)
    params = init_ffn_params(kp, E, Fd)

    out = ffn_forward(x, *params)
    out = jax.block_until_ready(out)

    ref = ffn_reference(x, *params)
    assert out.shape == (B, S, E)
    assert jnp.allclose(out, ref, atol=2e-4, rtol=2e-4), "mismatch vs reference"

    print("KERNEL_OK")
</pallas_src>

<mosaic_0001>
module attributes {stable_mosaic.version = 11 : i64} {
  func.func @kernel(%arg0: i32, %arg1: i32, %arg2: memref<16x128xf32, #tpu.memory_space<vmem>>, %arg3: memref<1x128xf32, #tpu.memory_space<vmem>>, %arg4: memref<1x128xf32, #tpu.memory_space<vmem>>, %arg5: memref<128x64xf32, #tpu.memory_space<vmem>>, %arg6: memref<1x64xf32, #tpu.memory_space<vmem>>, %arg7: memref<64x128xf32, #tpu.memory_space<vmem>>, %arg8: memref<1x128xf32, #tpu.memory_space<vmem>>, %arg9: memref<16x128xf32, #tpu.memory_space<vmem>>, %arg10: memref<16x128xf32, #tpu.memory_space<vmem>>, %arg11: memref<16x128xf32, #tpu.memory_space<vmem>>) attributes {dimension_semantics = [#tpu.dimension_semantics<parallel>, #tpu.dimension_semantics<arbitrary>], iteration_bounds = array<i64: 1, 1>, scalar_prefetch = 0 : i64, scratch_operands = 2 : i64, tpu.core_type = #tpu.core_type<tc>, window_params = [{transform_indices = @transform_0, window_bounds = array<i64: 16, 128>}, {pipeline_mode = #tpu.pipeline_mode<synchronous>, transform_indices = @transform_1, window_bounds = array<i64: 1, 128>}, {pipeline_mode = #tpu.pipeline_mode<synchronous>, transform_indices = @transform_2, window_bounds = array<i64: 1, 128>}, {transform_indices = @transform_3, window_bounds = array<i64: 128, 64>}, {transform_indices = @transform_4, window_bounds = array<i64: 1, 64>}, {transform_indices = @transform_5, window_bounds = array<i64: 64, 128>}, {pipeline_mode = #tpu.pipeline_mode<synchronous>, transform_indices = @transform_6, window_bounds = array<i64: 1, 128>}, {transform_indices = @transform_7, window_bounds = array<i64: 16, 128>}]} {
    %c0_i32 = arith.constant 0 : i32
    %0 = arith.cmpi eq, %arg1, %c0_i32 : i32
    %1 = arith.extui %0 : i1 to i32
    %c0_i32_0 = arith.constant 0 : i32
    %2 = arith.cmpi ne, %1, %c0_i32_0 : i32
    scf.if %2 {
      %c0_18 = arith.constant 0 : index
      %c0_19 = arith.constant 0 : index
      %25 = vector.load %arg2[%c0_18, %c0_19] : memref<16x128xf32, #tpu.memory_space<vmem>>, vector<16x128xf32>
      %cst_20 = arith.constant dense<0.000000e+00> : vector<16xf32>
      %26 = vector.multi_reduction <add>, %25, %cst_20 [1] : vector<16x128xf32> to vector<16xf32>
      %27 = vector.shape_cast %26 : vector<16xf32> to vector<16x1xf32>
      %cst_21 = arith.constant 3.125000e-02 : f32
      %28 = vector.broadcast %cst_21 : f32 to vector<16x1xf32>
      %29 = arith.mulf %27, %28 : vector<16x1xf32>
      %30 = vector.broadcast %29 : vector<16x1xf32> to vector<16x128xf32>
      %31 = arith.subf %25, %30 : vector<16x128xf32>
      %32 = tpu.iota {dimensions = array<i32: 1>} : vector<16x128xi32>
      %c32_i32 = arith.constant 32 : i32
      %33 = vector.broadcast %c32_i32 : i32 to vector<16x128xi32>
      %34 = arith.cmpi slt, %32, %33 : vector<16x128xi32>
      %cst_22 = arith.constant 0.000000e+00 : f32
      %35 = vector.broadcast %cst_22 : f32 to vector<16x128xf32>
      %36 = arith.select %34, %31, %35 : vector<16x128xi1>, vector<16x128xf32>
      %37 = arith.mulf %36, %36 : vector<16x128xf32>
      %cst_23 = arith.constant dense<0.000000e+00> : vector<16xf32>
      %38 = vector.multi_reduction <add>, %37, %cst_23 [1] : vector<16x128xf32> to vector<16xf32>
      %39 = vector.shape_cast %38 : vector<16xf32> to vector<16x1xf32>
      %cst_24 = arith.constant 3.125000e-02 : f32
      %40 = vector.broadcast %cst_24 : f32 to vector<16x1xf32>
      %41 = arith.mulf %39, %40 : vector<16x1xf32>
      %cst_25 = arith.constant 9.99999974E-6 : f32
      %42 = vector.broadcast %cst_25 : f32 to vector<16x1xf32>
      %43 = arith.addf %41, %42 : vector<16x1xf32>
      %44 = math.rsqrt %43 : vector<16x1xf32>
      %45 = vector.broadcast %44 : vector<16x1xf32> to vector<16x128xf32>
      %46 = arith.mulf %31, %45 : vector<16x128xf32>
      %c0_26 = arith.constant 0 : index
      %c0_27 = arith.constant 0 : index
      %47 = vector.load %arg3[%c0_26, %c0_27] : memref<1x128xf32, #tpu.memory_space<vmem>>, vector<1x128xf32>
      %48 = vector.broadcast %47 : vector<1x128xf32> to vector<16x128xf32>
      %49 = arith.mulf %46, %48 : vector<16x128xf32>
      %c0_28 = arith.constant 0 : index
      %c0_29 = arith.constant 0 : index
      %50 = vector.load %arg4[%c0_28, %c0_29] : memref<1x128xf32, #tpu.memory_space<vmem>>, vector<1x128xf32>
      %51 = vector.broadcast %50 : vector<1x128xf32> to vector<16x128xf32>
      %52 = arith.addf %49, %51 : vector<16x128xf32>
      %c0_30 = arith.constant 0 : index
      %c0_31 = arith.constant 0 : index
      %53 = vector.load %arg10[%c0_30, %c0_31] : memref<16x128xf32, #tpu.memory_space<vmem>>, vector<16x128xf32>
      tpu.vector_store %arg10[%c0_30, %c0_31], %52 {strides = array<i32>} : memref<16x128xf32, #tpu.memory_space<vmem>>, vector<16x128xf32>,
      %cst_32 = arith.constant 0.000000e+00 : f32
      %54 = vector.broadcast %cst_32 : f32 to vector<16x128xf32>
      %c0_33 = arith.constant 0 : index
      %c0_34 = arith.constant 0 : index
      %55 = vector.load %arg11[%c0_33, %c0_34] : memref<16x128xf32, #tpu.memory_space<vmem>>, vector<16x128xf32>
      tpu.vector_store %arg11[%c0_33, %c0_34], %54 {strides = array<i32>} : memref<16x128xf32, #tpu.memory_space<vmem>>, vector<16x128xf32>,
    } else {
    }
    %c0 = arith.constant 0 : index
    %c0_1 = arith.constant 0 : index
    %3 = vector.load %arg10[%c0, %c0_1] : memref<16x128xf32, #tpu.memory_space<vmem>>, vector<16x128xf32>
    %c0_2 = arith.constant 0 : index
    %c0_3 = arith.constant 0 : index
    %4 = vector.load %arg5[%c0_2, %c0_3] : memref<128x64xf32, #tpu.memory_space<vmem>>, vector<128x64xf32>
    %cst = arith.constant dense<0.000000e+00> : vector<16x64xf32>
    %5 = tpu.matmul %3, %4, %cst {dimension_numbers = #tpu.dot_dimension_numbers<[1], [0], [0], [1], [0, 0, 1, 1], [], []>} : vector<16x128xf32>, vector<128x64xf32>, vector<16x64xf32> -> vector<16x64xf32>
    %c0_4 = arith.constant 0 : index
    %c0_5 = arith.constant 0 : index
    %6 = vector.load %arg6[%c0_4, %c0_5] : memref<1x64xf32, #tpu.memory_space<vmem>>, vector<1x64xf32>
    %7 = vector.broadcast %6 : vector<1x64xf32> to vector<16x64xf32>
    %8 = arith.addf %5, %7 : vector<16x64xf32>
    %cst_6 = arith.constant 5.000000e-01 : f32
    %9 = vector.broadcast %cst_6 : f32 to vector<16x64xf32>
    %10 = arith.mulf %9, %8 : vector<16x64xf32>
    %cst_7 = arith.constant 0.707106769 : f32
    %11 = vector.broadcast %cst_7 : f32 to vector<16x64xf32>
    %12 = arith.mulf %8, %11 : vector<16x64xf32>
    %13 = math.erf %12 : vector<16x64xf32>
    %cst_8 = arith.constant 1.000000e+00 : f32
    %14 = vector.broadcast %cst_8 : f32 to vector<16x64xf32>
    %15 = arith.addf %14, %13 : vector<16x64xf32>
    %16 = arith.mulf %10, %15 : vector<16x64xf32>
    %c0_9 = arith.constant 0 : index
    %c0_10 = arith.constant 0 : index
    %17 = vector.load %arg11[%c0_9, %c0_10] : memref<16x128xf32, #tpu.memory_space<vmem>>, vector<16x128xf32>
    %c0_11 = arith.constant 0 : index
    %c0_12 = arith.constant 0 : index
    %18 = vector.load %arg7[%c0_11, %c0_12] : memref<64x128xf32, #tpu.memory_space<vmem>>, vector<64x128xf32>
    %cst_13 = arith.constant dense<0.000000e+00> : vector<16x128xf32>
    %19 = tpu.matmul %16, %18, %cst_13 {dimension_numbers = #tpu.dot_dimension_numbers<[1], [0], [0], [1], [0, 0, 1, 1], [], []>} : vector<16x64xf32>, vector<64x128xf32>, vector<16x128xf32> -> vector<16x128xf32>
    %20 = arith.addf %17, %19 : vector<16x128xf32>
    %c0_14 = arith.constant 0 : index
    %c0_15 = arith.constant 0 : index
    %21 = vector.load %arg11[%c0_14, %c0_15] : memref<16x128xf32, #tpu.memory_space<vmem>>, vector<16x128xf32>
    tpu.vector_store %arg11[%c0_14, %c0_15], %20 {strides = array<i32>} : memref<16x128xf32, #tpu.memory_space<vmem>>, vector<16x128xf32>,
    %c0_i32_16 = arith.constant 0 : i32
    %22 = arith.cmpi eq, %arg1, %c0_i32_16 : i32
    %23 = arith.extui %22 : i1 to i32
    %c0_i32_17 = arith.constant 0 : i32
    %24 = arith.cmpi ne, %23, %c0_i32_17 : i32
    scf.if %24 {
      %c0_18 = arith.constant 0 : index
      %c0_19 = arith.constant 0 : index
      %25 = vector.load %arg11[%c0_18, %c0_19] : memref<16x128xf32, #tpu.memory_space<vmem>>, vector<16x128xf32>
      %c0_20 = arith.constant 0 : index
      %c0_21 = arith.constant 0 : index
      %26 = vector.load %arg8[%c0_20, %c0_21] : memref<1x128xf32, #tpu.memory_space<vmem>>, vector<1x128xf32>
      %27 = vector.broadcast %26 : vector<1x128xf32> to vector<16x128xf32>
      %28 = arith.addf %25, %27 : vector<16x128xf32>
      %c0_22 = arith.constant 0 : index
      %c0_23 = arith.constant 0 : index
      %29 = vector.load %arg2[%c0_22, %c0_23] : memref<16x128xf32, #tpu.memory_space<vmem>>, vector<16x128xf32>
      %30 = arith.addf %29, %28 : vector<16x128xf32>
      %c0_24 = arith.constant 0 : index
      %c0_25 = arith.constant 0 : index
      %31 = vector.load %arg9[%c0_24, %c0_25] : memref<16x128xf32, #tpu.memory_space<vmem>>, vector<16x128xf32>
      tpu.vector_store %arg9[%c0_24, %c0_25], %30 {strides = array<i32>} : memref<16x128xf32, #tpu.memory_space<vmem>>, vector<16x128xf32>,
    } else {
    }
    return
  }
  func.func @transform_0(%arg0: i32, %arg1: i32) -> (i32, i32) {
    %c0_i32 = arith.constant 0 : i32
    %c0_i32_0 = arith.constant 0 : i32
    return %arg0, %c0_i32 : i32, i32
  }
  func.func @transform_1(%arg0: i32, %arg1: i32) -> (i32, i32) {
    %c0_i32 = arith.constant 0 : i32
    %c0_i32_0 = arith.constant 0 : i32
    %c0_i32_1 = arith.constant 0 : i32
    return %c0_i32, %c0_i32_0 : i32, i32
  }
  func.func @transform_2(%arg0: i32, %arg1: i32) -> (i32, i32) {
    %c0_i32 = arith.constant 0 : i32
    %c0_i32_0 = arith.constant 0 : i32
    %c0_i32_1 = arith.constant 0 : i32
    return %c0_i32, %c0_i32_0 : i32, i32
  }
  func.func @transform_3(%arg0: i32, %arg1: i32) -> (i32, i32) {
    %c0_i32 = arith.constant 0 : i32
    %c0_i32_0 = arith.constant 0 : i32
    return %c0_i32, %arg1 : i32, i32
  }
  func.func @transform_4(%arg0: i32, %arg1: i32) -> (i32, i32) {
    %c0_i32 = arith.constant 0 : i32
    %c0_i32_0 = arith.constant 0 : i32
    return %c0_i32, %arg1 : i32, i32
  }
  func.func @transform_5(%arg0: i32, %arg1: i32) -> (i32, i32) {
    %c0_i32 = arith.constant 0 : i32
    %c0_i32_0 = arith.constant 0 : i32
    return %arg1, %c0_i32 : i32, i32
  }
  func.func @transform_6(%arg0: i32, %arg1: i32) -> (i32, i32) {
    %c0_i32 = arith.constant 0 : i32
    %c0_i32_0 = arith.constant 0 : i32
    %c0_i32_1 = arith.constant 0 : i32
    return %c0_i32, %c0_i32_0 : i32, i32
  }
  func.func @transform_7(%arg0: i32, %arg1: i32) -> (i32, i32) {
    %c0_i32 = arith.constant 0 : i32
    %c0_i32_0 = arith.constant 0 : i32
    return %arg0, %c0_i32 : i32, i32
  }
}

</mosaic_0001>

<llo_original>
// kernel: tpu_custom_call.1
$region0: #{tpu_custom_call.1}
  #allocation0 [shape = 'u32[]', space=smem, size = 0x4, offset = 0x4, fixed_abs, tag = 'smem constant byte address 0x4 - core index']
  #allocation1 [shape = 'u32[144,128]{1,0:T(1,128)}', space=vmem, size = 0x12000, scoped, tag = 'internal scratch']
  #allocation2 [shape = 'f32[16,128]{1,0:T(8,128)}', space=vmem, size = 0x2000, scoped, tag = 'scratch operand']
  #allocation3 [shape = 'f32[16,128]{1,0:T(8,128)}', space=vmem, size = 0x2000, scoped, tag = 'scratch operand']
  %s0 = inlined_call_operand.vmem [shape: f32[16,128], index: 0, kind: input, shape index: {}]
  %s1 = inlined_call_operand.vmem [shape: f32[1,128], index: 1, kind: input, shape index: {}]
  %s2 = inlined_call_operand.vmem [shape: f32[1,128], index: 2, kind: input, shape index: {}]
  %s3 = inlined_call_operand.vmem [shape: f32[128,64], index: 3, kind: input, shape index: {}]
  %s4 = inlined_call_operand.vmem [shape: f32[1,64], index: 4, kind: input, shape index: {}]
  %s5 = inlined_call_operand.vmem [shape: f32[64,128], index: 5, kind: input, shape index: {}]
  %s6 = inlined_call_operand.vmem [shape: f32[1,128], index: 6, kind: input, shape index: {}]
  %s7 = inlined_call_operand.hbm [shape: f32[16,128], index: 7, kind: output, shape index: {}]
  %s8 = sld [smem:[#allocation0]]
  $region46: #{tpu_custom_call.1} parent=0
    _
  %s10 = ssub.s32 1, %s8
  %s11 = scalar_select 0, %s10, %s8
  $region1: #{tpu_custom_call.1} parent=0
    #allocation4 [shape = 'u8[8192]{0}', space=vmem, size = 0x2000, scoped, tag = 'output window, operand 0, single buffered']
    #allocation5 [shape = 's32[1]{0}', space=sflag, size = 0x4, scoped, tag = 'scoped memory for tpu_custom_call.1']
    %12 = vsyncpa [#allocation5], 0
    // Predicated region
    $region2: #{tpu_custom_call.1} parent=1 // pred_check
      _
    $region3: #{tpu_custom_call.1} parent=1 // pred_check_branch
      %14 = sbr.rel (0) target = $region5
    $region4: #{tpu_custom_call.1} parent=1 // pred_region
      _
    $region5: #{tpu_custom_call.1} parent=1 // pred_fallthru
      _
    // Predicated region
    $region6: #{tpu_custom_call.1} parent=1 // pred_check
      _
    $region7: #{tpu_custom_call.1} parent=1 // pred_check_branch
      %16 = sbr.rel (0) target = $region9
    $region8: #{tpu_custom_call.1} parent=1 // pred_region
      _
    $region9: #{tpu_custom_call.1} parent=1 // pred_fallthru
      _
    // Predicated region
    $region10: #{tpu_custom_call.1} parent=1 // pred_check
      _
    $region11: #{tpu_custom_call.1} parent=1 // pred_check_branch
      %18 = sbr.rel (0) target = $region13
    $region12: #{tpu_custom_call.1} parent=1 // pred_region
      _
    $region13: #{tpu_custom_call.1} parent=1 // pred_fallthru
      _
    // Predicated region
    $region14: #{tpu_custom_call.1} parent=1 // pred_check
      _
    $region15: #{tpu_custom_call.1} parent=1 // pred_check_branch
      %20 = sbr.rel (0) target = $region17
    $region16: #{tpu_custom_call.1} parent=1 // pred_region
      _
    $region17: #{tpu_custom_call.1} parent=1 // pred_fallthru
      _
    // Predicated region
    $region18: #{tpu_custom_call.1} parent=1 // pred_check
      _
    $region19: #{tpu_custom_call.1} parent=1 // pred_check_branch
      %22 = sbr.rel (0) target = $region21
    $region20: #{tpu_custom_call.1} parent=1 // pred_region
      _
    $region21: #{tpu_custom_call.1} parent=1 // pred_fallthru
      _
    // Predicated region
    $region22: #{tpu_custom_call.1} parent=1 // pred_check
      _
    $region23: #{tpu_custom_call.1} parent=1 // pred_check_branch
      %24 = sbr.rel (0) target = $region25
    $region24: #{tpu_custom_call.1} parent=1 // pred_region
      _
    $region25: #{tpu_custom_call.1} parent=1 // pred_fallthru
      _
    // Predicated region
    $region26: #{tpu_custom_call.1} parent=1 // pred_check
      _
    $region27: #{tpu_custom_call.1} parent=1 // pred_check_branch
      %26 = sbr.rel (0) target = $region29
    $region28: #{tpu_custom_call.1} parent=1 // pred_region
      _
    $region29: #{tpu_custom_call.1} parent=1 // pred_fallthru
      _
    %p27 = scmp.eq.s32.totalorder 0, 0
    // Predicated region
    $region30: #{tpu_custom_call.1} parent=1 // pred_check
      %p28 = pneg %p27
    $region31: #{tpu_custom_call.1} parent=1 // pred_check_branch
      %30 = sbr.rel (%p28) target = $region33
    $region32: #{tpu_custom_call.1} parent=1 // pred_region
      %v31 = vld [vmem:[%s0] sm:$0xff]
      %v32 = vld [vmem:[%s0 + $0x8] sm:$0xff]
      %33 = vadd.xlane.f32.xlu0 %v31
      %v34 = vpop.xlane.xlu0 %33
      %35 = vadd.xlane.f32.xlu0 %v32
      %v36 = vpop.xlane.xlu0 %35
      %v37 = vmul.f32 %v34, 0.03125
      %v38 = vmul.f32 %v36, 0.03125
      %v39 = vsub.f32 %v31, %v37
      %v40 = vsub.f32 %v32, %v38
      %v41 = vlaneseq
      %v42 = vand.u32 %v41, 127
      %vm43 = vcmp.lt.s32.totalorder %v42, 32
      %v44 = vsel %vm43, %v39, 0.0
      %v45 = vsel %vm43, %v40, 0.0
      %v46 = vmul.f32 %v44, %v44
      %v47 = vmul.f32 %v45, %v45
      %48 = vadd.xlane.f32.xlu0 %v46
      %v49 = vpop.xlane.xlu0 %48
      %50 = vadd.xlane.f32.xlu0 %v47
      %v51 = vpop.xlane.xlu0 %50
      %v52 = vmul.f32 %v49, 0.03125
      %v53 = vmul.f32 %v51, 0.03125
      %v54 = vadd.f32 %v52, 1e-05
      %v55 = vadd.f32 %v53, 1e-05
      %v56 = vrsqrt.pop %v54
      %v57 = vrsqrt.pop %v55
      %v58 = vmul.f32 %v39, %v56
      %v59 = vmul.f32 %v40, %v57
      %v60 = vld [vmem:[%s1] sm:$0x1]
      %v62 = vlaneseq
      %v63 = vshrl.u32 %v62, 7
      %v64 = vsub.s32 0, %v63
      %v65 = vrot.slane %v60, %v64
      %v67 = vmul.f32 %v58, %v65
      %v68 = vmul.f32 %v59, %v65
      %v69 = vld [vmem:[%s2] sm:$0x1]
      %v71 = vlaneseq
      %v72 = vshrl.u32 %v71, 7
      %v73 = vsub.s32 0, %v72
      %v74 = vrot.slane %v69, %v73
      %v76 = vadd.f32 %v67, %v74
      %v77 = vadd.f32 %v68, %v74
      %78 = vst [vmem:[#allocation2] sm:$0xff] %v76
      %79 = vst [vmem:[#allocation2 + $0x8] sm:$0xff] %v77
      %80 = vst [vmem:[#allocation3] sm:$0xff] 0.0
      %81 = vst [vmem:[#allocation3 + $0x8] sm:$0xff] 0.0
    $region33: #{tpu_custom_call.1} parent=1 // pred_fallthru
      _
    %v82 = vld [vmem:[#allocation2] sm:$0xff]
    %v83 = vld [vmem:[#allocation2 + $0x8] sm:$0xff]
    %v84 = vld [vmem:[%s3] sm:$0xff]
    %v85 = vld [vmem:[%s3 + $0x8] sm:$0xff]
    %v86 = vld [vmem:[%s3 + $0x10] sm:$0xff]
    %v87 = vld [vmem:[%s3 + $0x18] sm:$0xff]
    %v88 = vld [vmem:[%s3 + $0x20] sm:$0xff]
    %v89 = vld [vmem:[%s3 + $0x28] sm:$0xff]
    %v90 = vld [vmem:[%s3 + $0x30] sm:$0xff]
    %v91 = vld [vmem:[%s3 + $0x38] sm:$0xff]
    %v92 = vld [vmem:[%s3 + $0x40] sm:$0xff]
    %v93 = vld [vmem:[%s3 + $0x48] sm:$0xff]
    %v94 = vld [vmem:[%s3 + $0x50] sm:$0xff]
    %v95 = vld [vmem:[%s3 + $0x58] sm:$0xff]
    %v96 = vld [vmem:[%s3 + $0x60] sm:$0xff]
    %v97 = vld [vmem:[%s3 + $0x68] sm:$0xff]
    %v98 = vld [vmem:[%s3 + $0x70] sm:$0xff]
    %v99 = vld [vmem:[%s3 + $0x78] sm:$0xff]
    %v100 = vld [vmem:[%s4] sm:$0x1]
    %v102 = vlaneseq
    %v103 = vshrl.u32 %v102, 7
    %v104 = vsub.s32 0, %v103
    %v105 = vrot.slane %v100, %v104
    %107 = vmatprep.subr.mxu0 0.0
    %108 = vmatpush1.msra.mxu0 %v84
    %109 = vmatprep.subr.mxu0 0.0
    %110 = vmatpush1.msra.mxu0 %v85
    %111 = vmatprep.subr.mxu0 0.0
    %112 = vmatpush1.msra.mxu0 %v86
    %113 = vmatprep.subr.mxu0 0.0
    %114 = vmatpush1.msra.mxu0 %v87
    %115 = vmatprep.subr.mxu0 0.0
    %116 = vmatpush1.msra.mxu0 %v88
    %117 = vmatprep.subr.mxu0 0.0
    %118 = vmatpush1.msra.mxu0 %v89
    %119 = vmatprep.subr.mxu0 0.0
    %120 = vmatpush1.msra.mxu0 %v90
    %121 = vmatprep.subr.mxu0 0.0
    %122 = vmatpush1.msra.mxu0 %v91
    %123 = vmatprep.subr.mxu0 0.0
    %124 = vmatpush1.msra.mxu0 %v92
    %125 = vmatprep.subr.mxu0 0.0
    %126 = vmatpush1.msra.mxu0 %v93
    %127 = vmatprep.subr.mxu0 0.0
    %128 = vmatpush1.msra.mxu0 %v94
    %129 = vmatprep.subr.mxu0 0.0
    %130 = vmatpush1.msra.mxu0 %v95
    %131 = vmatprep.subr.mxu0 0.0
    %132 = vmatpush1.msra.mxu0 %v96
    %133 = vmatprep.subr.mxu0 0.0
    %134 = vmatpush1.msra.mxu0 %v97
    %135 = vmatprep.subr.mxu0 0.0
    %136 = vmatpush1.msra.mxu0 %v98
    %137 = vmatprep.subr.mxu0 0.0
    %138 = vmatpush1.msra.mxu0 %v99
    %139 = vmatprep.subr.mxu0 0.0
    %140 = vmatpush1.msra.mxu0 0.0
    %141 = vmatprep.subr.mxu0 0.0
    %142 = vmatpush1.msra.mxu0 0.0
    %143 = vmatprep.subr.mxu0 0.0
    %144 = vmatpush1.msra.mxu0 0.0
    %145 = vmatprep.subr.mxu0 0.0
    %146 = vmatpush1.msra.mxu0 0.0
    %147 = vmatprep.subr.mxu0 0.0
    %148 = vmatpush1.msra.mxu0 0.0
    %149 = vmatprep.subr.mxu0 0.0
    %150 = vmatpush1.msra.mxu0 0.0
    %151 = vmatprep.subr.mxu0 0.0
    %152 = vmatpush1.msra.mxu0 0.0
    %153 = vmatprep.subr.mxu0 0.0
    %154 = vmatpush1.msra.mxu0 0.0
    %155 = vmatprep.subr.mxu0 0.0
    %156 = vmatpush1.msra.mxu0 0.0
    %157 = vmatprep.subr.mxu0 0.0
    %158 = vmatpush1.msra.mxu0 0.0
    %159 = vmatprep.subr.mxu0 0.0
    %160 = vmatpush1.msra.mxu0 0.0
    %161 = vmatprep.subr.mxu0 0.0
    %162 = vmatpush1.msra.mxu0 0.0
    %163 = vmatprep.subr.mxu0 0.0
    %164 = vmatpush1.msra.mxu0 0.0
    %165 = vmatprep.subr.mxu0 0.0
    %166 = vmatpush1.msra.mxu0 0.0
    %167 = vmatprep.subr.mxu0 0.0
    %168 = vmatpush1.msra.mxu0 0.0
    %169 = vmatprep.subr.mxu0 0.0
    %170 = vmatpush1.msra.mxu0 0.0
    %171 = vmatprep.mubr.f32.mxu0 0.0
    %172 = vmatmul.mubr.f32.gmra.mrb[0].mxu0 %v82
    %v173 = vpop.f32.mrb[0].mxu0
    %v174 = vadd.f32 %v105, %v173
    %v175 = vpop.f32.mrb[0].mxu0
    %176 = vmatprep.mubr.f32.mxu0 0.0
    %177 = vmatmul.mubr.f32.gmra.mrb[0].mxu0 %v83
    %v178 = vpop.f32.mrb[0].mxu0
    %v179 = vadd.f32 %v105, %v178
    %v180 = vpop.f32.mrb[0].mxu0
    %181 = vdwg.mxu0
    %v182 = vmul.f32 %v174, 0.5
    %v183 = vmul.f32 %v179, 0.5
    %v184 = vmul.f32 %v174, 0.70710677
    %v185 = vmul.f32 %v179, 0.70710677
    %v186 = verf.f32.pop %v184
    %v187 = verf.f32.pop %v185
    %v188 = vadd.f32 %v186, 1.0
    %v189 = vadd.f32 %v187, 1.0
    %v190 = vmul.f32 %v182, %v188
    %v191 = vmul.f32 %v183, %v189
    %v192 = vld [vmem:[#allocation3] sm:$0xff]
    %v193 = vld [vmem:[#allocation3 + $0x8] sm:$0xff]
    %v194 = vld [vmem:[%s5] sm:$0xff]
    %v195 = vld [vmem:[%s5 + $0x8] sm:$0xff]
    %v196 = vld [vmem:[%s5 + $0x10] sm:$0xff]
    %v197 = vld [vmem:[%s5 + $0x18] sm:$0xff]
    %v198 = vld [vmem:[%s5 + $0x20] sm:$0xff]
    %v199 = vld [vmem:[%s5 + $0x28] sm:$0xff]
    %v200 = vld [vmem:[%s5 + $0x30] sm:$0xff]
    %v201 = vld [vmem:[%s5 + $0x38] sm:$0xff]
    %vm202 = vcmask 523264
    %v204 = vsel %vm202, %v190, 0
    %v207 = vsel %vm202, %v191, 0
    %209 = vmatprep.subr.mxu0 0.0
    %210 = vmatpush1.msra.mxu0 %v194
    %211 = vmatprep.subr.mxu0 0.0
    %212 = vmatpush1.msra.mxu0 %v195
    %213 = vmatprep.subr.mxu0 0.0
    %214 = vmatpush1.msra.mxu0 %v196
    %215 = vmatprep.subr.mxu0 0.0
    %216 = vmatpush1.msra.mxu0 %v197
    %217 = vmatprep.subr.mxu0 0.0
    %218 = vmatpush1.msra.mxu0 %v198
    %219 = vmatprep.subr.mxu0 0.0
    %220 = vmatpush1.msra.mxu0 %v199
    %221 = vmatprep.subr.mxu0 0.0
    %222 = vmatpush1.msra.mxu0 %v200
    %223 = vmatprep.subr.mxu0 0.0
    %224 = vmatpush1.msra.mxu0 %v201
    %225 = vmatprep.subr.mxu0 0.0
    %226 = vmatpush1.msra.mxu0 0.0
    %227 = vmatprep.subr.mxu0 0.0
    %228 = vmatpush1.msra.mxu0 0.0
    %229 = vmatprep.subr.mxu0 0.0
    %230 = vmatpush1.msra.mxu0 0.0
    %231 = vmatprep.subr.mxu0 0.0
    %232 = vmatpush1.msra.mxu0 0.0
    %233 = vmatprep.subr.mxu0 0.0
    %234 = vmatpush1.msra.mxu0 0.0
    %235 = vmatprep.subr.mxu0 0.0
    %236 = vmatpush1.msra.mxu0 0.0
    %237 = vmatprep.subr.mxu0 0.0
    %238 = vmatpush1.msra.mxu0 0.0
    %239 = vmatprep.subr.mxu0 0.0
    %240 = vmatpush1.msra.mxu0 0.0
    %241 = vmatprep.subr.mxu0 0.0
    %242 = vmatpush1.msra.mxu0 0.0
    %243 = vmatprep.subr.mxu0 0.0
    %244 = vmatpush1.msra.mxu0 0.0
    %245 = vmatprep.subr.mxu0 0.0
    %246 = vmatpush1.msra.mxu0 0.0
    %247 = vmatprep.subr.mxu0 0.0
    %248 = vmatpush1.msra.mxu0 0.0
    %249 = vmatprep.subr.mxu0 0.0
    %250 = vmatpush1.msra.mxu0 0.0
    %251 = vmatprep.subr.mxu0 0.0
    %252 = vmatpush1.msra.mxu0 0.0
    %253 = vmatprep.subr.mxu0 0.0
    %254 = vmatpush1.msra.mxu0 0.0
    %255 = vmatprep.subr.mxu0 0.0
    %256 = vmatpush1.msra.mxu0 0.0
    %257 = vmatprep.subr.mxu0 0.0
    %258 = vmatpush1.msra.mxu0 0.0
    %259 = vmatprep.subr.mxu0 0.0
    %260 = vmatpush1.msra.mxu0 0.0
    %261 = vmatprep.subr.mxu0 0.0
    %262 = vmatpush1.msra.mxu0 0.0
    %263 = vmatprep.subr.mxu0 0.0
    %264 = vmatpush1.msra.mxu0 0.0
    %265 = vmatprep.subr.mxu0 0.0
    %266 = vmatpush1.msra.mxu0 0.0
    %267 = vmatprep.subr.mxu0 0.0
    %268 = vmatpush1.msra.mxu0 0.0
    %269 = vmatprep.subr.mxu0 0.0
    %270 = vmatpush1.msra.mxu0 0.0
    %271 = vmatprep.subr.mxu0 0.0
    %272 = vmatpush1.msra.mxu0 0.0
    %273 = vmatprep.mubr.f32.mxu0 0.0
    %274 = vmatmul.mubr.f32.gmra.mrb[0].mxu0 %v204
    %v275 = vpop.f32.mrb[0].mxu0
    %v276 = vadd.f32 0.0, %v275
    %v277 = vpop.f32.mrb[0].mxu0
    %278 = vmatprep.mubr.f32.mxu0 0.0
    %279 = vmatmul.mubr.f32.gmra.mrb[0].mxu0 %v207
    %v280 = vpop.f32.mrb[0].mxu0
    %v281 = vadd.f32 0.0, %v280
    %v282 = vpop.f32.mrb[0].mxu0
    %283 = vdwg.mxu0
    %v284 = vadd.f32 %v192, %v276
    %v285 = vadd.f32 %v193, %v281
    %286 = vst [vmem:[#allocation3] sm:$0xff] %v284
    %287 = vst [vmem:[#allocation3 + $0x8] sm:$0xff] %v285
    // Predicated region
    $region34: #{tpu_custom_call.1} parent=1 // pred_check
      %p288 = pneg %p27
    $region35: #{tpu_custom_call.1} parent=1 // pred_check_branch
      %290 = sbr.rel (%p288) target = $region37
    $region36: #{tpu_custom_call.1} parent=1 // pred_region
      %v291 = vld [vmem:[#allocation3] sm:$0xff]
      %v292 = vld [vmem:[#allocation3 + $0x8] sm:$0xff]
      %v293 = vld [vmem:[%s6] sm:$0x1]
      %v295 = vlaneseq
      %v296 = vshrl.u32 %v295, 7
      %v297 = vsub.s32 0, %v296
      %v298 = vrot.slane %v293, %v297
      %v300 = vadd.f32 %v291, %v298
      %v301 = vadd.f32 %v292, %v298
      %v302 = vld [vmem:[%s0] sm:$0xff]
      %v303 = vld [vmem:[%s0 + $0x8] sm:$0xff]
      %v304 = vadd.f32 %v302, %v300
      %v305 = vadd.f32 %v303, %v301
      %306 = vst [vmem:[#allocation4] sm:$0xff] %v304
      %307 = vst [vmem:[#allocation4 + $0x8] sm:$0xff] %v305
    $region37: #{tpu_custom_call.1} parent=1 // pred_fallthru
      _
    // Predicated region
    $region38: #{tpu_custom_call.1} parent=1 // pred_check
      _
    $region39: #{tpu_custom_call.1} parent=1 // pred_check_branch
      %309 = sbr.rel (0) target = $region41
    $region40: #{tpu_custom_call.1} parent=1 // pred_region
      %s311 = ssub.s32 256, 256
      %312 = vsyncadd [#allocation5], %s311
      %s313 = sshll.u32 [#allocation4], 4
      %s314 = int_to_ptr.vmem [resolvable:$true] %s313
      %319 = dma.vmem_to_hbm [thread:$0]  %s314, 256, %s7, [#allocation5], 128, 128, 8
    $region41: #{tpu_custom_call.1} parent=1 // pred_fallthru
      _
    // Predicated region
    $region42: #{tpu_custom_call.1} parent=1 // pred_check
      _
    $region43: #{tpu_custom_call.1} parent=1 // pred_check_branch
      %321 = sbr.rel (0) target = $region45
    $region44: #{tpu_custom_call.1} parent=1 // pred_region
      %322 = dma.done [#allocation5], 256
    $region45: #{tpu_custom_call.1} parent=1 // pred_fallthru
      _
    %323 = vsyncpa [#allocation5], 1

</llo_original>
